<compile_context>
chip_gen: v7x
topology: tpu7x:2x2x1
jax: 0.10.0
libtpu: 0.0.40
codegen_flags: <defaults>
</compile_context>

<pallas_src>
import functools

import jax
import jax.numpy as jnp
from jax import lax
from jax.experimental import pallas as pl
from jax.experimental.pallas import tpu as pltpu

HID_SIZE = 128
LANE = 128
TILE_B_CAP = 2048            # sweep 2048-8192 on real workloads
VMEM_LIMIT_BYTES = 48 * 1024 * 1024  # explicit: safe on v5e (128 MiB) and v7x (64 MiB)


def _round_up(x, m):
    return (x + m - 1) // m * m


def _cdiv(a, b):
    return -(-a // b)


def _a2c_fused_kernel(x_ref, w1_ref, b1_ref, wh_ref, bh_ref, out_ref, *, act_size):
    # base = ReLU(x @ W1 + b1)            -- MXU matmul + lane-dense VPU ops
    h = jnp.dot(x_ref[...], w1_ref[...], preferred_element_type=jnp.float32)
    h = jnp.maximum(h + b1_ref[...], 0.0)

    # Single fused head matmul: [TILE_B, 128] @ [128, HEAD_N]  (HEAD_N lane-dense)
    z = jnp.dot(h, wh_ref[...], preferred_element_type=jnp.float32) + bh_ref[...]

    # Per-column activation by lane index:
    #   cols [0, act)      -> tanh      (mu)
    #   cols [act, 2*act)  -> softplus  (var), stable form
    #   cols [2*act, ...)  -> identity  (value + zero padding)
    # One shared transcendental t = exp(-|z|) drives both tanh and softplus
    # (2 full-slab EUP passes instead of 3), and selects are applied branch-by-
    # branch to keep large temporaries' live ranges narrow.
    col = lax.broadcasted_iota(jnp.int32, z.shape, 1)
    t = jnp.exp(-jnp.abs(z))

    # softplus over the first 2*act lanes, identity elsewhere
    res = jnp.where(col < 2 * act_size, jnp.maximum(z, 0.0) + jnp.log1p(t), z)

    # tanh(z) = sign(z) * (1 - t^2) / (1 + t^2); denom in [1,2] is well
    # conditioned.  (pl.reciprocal(1+t2, approx=True) is the cheaper drop-in
    # when strict 1e-5 parity is not required.)
    t2 = t * t
    r = (1.0 - t2) / (1.0 + t2)
    tanh_z = jnp.where(z >= 0.0, r, -r)
    out_ref[...] = jnp.where(col < act_size, tanh_z, res)


def pack_head_params(params):
    """One-time packing of the three head layers into a lane-dense slab.

    Hoisted out of the per-call forward path (perf feedback): the zeros +
    dynamic-update-slice launches now happen exactly once.
    Returns a dict reusable by every a2c_continuous_forward call.
    """
    act_size = params["wmu"].shape[1]
    head_n = _round_up(2 * act_size + 1, LANE)

    wh = jnp.zeros((HID_SIZE, head_n), jnp.float32)
    wh = wh.at[:, :act_size].set(params["wmu"])
    wh = wh.at[:, act_size:2 * act_size].set(params["wvar"])
    wh = wh.at[:, 2 * act_size:2 * act_size + 1].set(params["wv"])

    bh = jnp.zeros((1, head_n), jnp.float32)
    bh = bh.at[:, :act_size].set(params["bmu"])
    bh = bh.at[:, act_size:2 * act_size].set(params["bvar"])
    bh = bh.at[:, 2 * act_size:2 * act_size + 1].set(params["bv"])

    return dict(w1=params["w1"], b1=params["b1"], wh=wh, bh=bh,
                act_size=act_size, head_n=head_n)


def a2c_continuous_forward(x, packed, *, tile_b=None):
    """x: [B, obs_size] f32. packed: output of pack_head_params.
    Returns (mu [B, act], var [B, act], value [B, 1])."""
    B, obs_size = x.shape
    act_size = packed["act_size"]
    head_n = packed["head_n"]

    # --- Batch tiling: big tiles amortize the ~0.35 us/step grid overhead and
    # lengthen DMAs; no host-side padding — Pallas masks the partial tail block.
    if tile_b is None:
        tile_b = min(TILE_B_CAP, _round_up(B, 8))
        # Give both v7x TensorCores work: if the batch is big enough to be worth
        # splitting but would otherwise be a single grid step, split it in two.
        if B >= 512 and _cdiv(B, tile_b) < 2:
            tile_b = _round_up(_cdiv(B, 2), 8)
    grid = (_cdiv(B, tile_b),)

    cost = pl.CostEstimate(
        flops=2 * B * (obs_size * HID_SIZE + HID_SIZE * head_n),
        transcendentals=2 * B * head_n,  # exp + log1p per output lane
        bytes_accessed=4 * (B * obs_size + obs_size * HID_SIZE + HID_SIZE
                            + HID_SIZE * head_n + head_n + B * head_n),
    )

    kernel = functools.partial(_a2c_fused_kernel, act_size=act_size)

    out = pl.pallas_call(
        kernel,
        out_shape=jax.ShapeDtypeStruct((B, head_n), jnp.float32),
        grid_spec=pltpu.PrefetchScalarGridSpec(
            num_scalar_prefetch=0,
            grid=grid,
            in_specs=[
                pl.BlockSpec((tile_b, obs_size), lambda i: (i, 0)),      # x tile
                pl.BlockSpec((obs_size, HID_SIZE), lambda i: (0, 0)),    # W1 (pinned)
                pl.BlockSpec((1, HID_SIZE), lambda i: (0, 0)),           # b1 (pinned)
                pl.BlockSpec((HID_SIZE, head_n), lambda i: (0, 0)),      # fused heads (pinned)
                pl.BlockSpec((1, head_n), lambda i: (0, 0)),             # fused bias (pinned)
            ],
            out_specs=pl.BlockSpec((tile_b, head_n), lambda i: (i, 0)),  # lane-dense slab
        ),
        compiler_params=pltpu.CompilerParams(
            dimension_semantics=("parallel",),
            vmem_limit_bytes=VMEM_LIMIT_BYTES,
        ),
        cost_estimate=cost,
    )(x, packed["w1"], packed["b1"], packed["wh"], packed["bh"])

    mu = out[:, :act_size]
    var = out[:, act_size:2 * act_size]
    val = out[:, 2 * act_size:2 * act_size + 1]
    return mu, var, val


def init_params(key, obs_size, act_size):
    """Deterministic init mimicking nn.Linear's U(-1/sqrt(fan_in), 1/sqrt(fan_in)).
    Weights stored as [in, out]; biases as [1, out] (TPU lane-friendly)."""
    def linear(k, fan_in, fan_out):
        k_w, k_b = jax.random.split(k)
        bound = 1.0 / jnp.sqrt(fan_in)
        w = jax.random.uniform(k_w, (fan_in, fan_out), jnp.float32, -bound, bound)
        b = jax.random.uniform(k_b, (1, fan_out), jnp.float32, -bound, bound)
        return w, b

    k1, k2, k3, k4 = jax.random.split(key, 4)
    w1, b1 = linear(k1, obs_size, HID_SIZE)
    wmu, bmu = linear(k2, HID_SIZE, act_size)
    wvar, bvar = linear(k3, HID_SIZE, act_size)
    wv, bv = linear(k4, HID_SIZE, 1)
    return dict(w1=w1, b1=b1, wmu=wmu, bmu=bmu, wvar=wvar, bvar=bvar, wv=wv, bv=bv)


if __name__ == "__main__":
    obs_size = 24
    act_size = 4
    batch = 8  # NOTE: at this toy size the call is launch-latency bound; the
    # tiled/fused structure pays off once batch reaches the hundreds-plus.

    key = jax.random.PRNGKey(0)
    k_params, k_x = jax.random.split(key)

    params = init_params(k_params, obs_size, act_size)
    packed = pack_head_params(params)          # one-time head packing (hoisted)
    jax.block_until_ready(packed)

    x = jax.random.normal(k_x, (batch, obs_size), jnp.float32)

    mu, var, value = a2c_continuous_forward(x, packed)
    jax.block_until_ready((mu, var, value))

    # Pure-JAX reference for a lightweight sanity check.
    h_ref = jnp.maximum(x @ params["w1"] + params["b1"], 0.0)
    mu_ref = jnp.tanh(h_ref @ params["wmu"] + params["bmu"])
    z_ref = h_ref @ params["wvar"] + params["bvar"]
    var_ref = jnp.maximum(z_ref, 0.0) + jnp.log1p(jnp.exp(-jnp.abs(z_ref)))
    val_ref = h_ref @ params["wv"] + params["bv"]

    assert mu.shape == (batch, act_size)
    assert var.shape == (batch, act_size)
    assert value.shape == (batch, 1)
    assert jnp.allclose(mu, mu_ref, atol=1e-5)
    assert jnp.allclose(var, var_ref, atol=1e-5)
    assert jnp.allclose(value, val_ref, atol=1e-5)
    assert bool(jnp.all(var >= 0.0))  # softplus output is non-negative

    # Multi-tile batch: exercises the 2-step grid and the masked partial tail
    # block (no host-side pad anymore).
    big_b = 1024 + 57
    xb = jax.random.normal(jax.random.PRNGKey(1), (big_b, obs_size), jnp.float32)
    mu_b, var_b, val_b = a2c_continuous_forward(xb, packed)
    jax.block_until_ready((mu_b, var_b, val_b))
    hb = jnp.maximum(xb @ params["w1"] + params["b1"], 0.0)
    assert mu_b.shape == (big_b, act_size)
    assert jnp.allclose(mu_b, jnp.tanh(hb @ params["wmu"] + params["bmu"]), atol=1e-5)
    zb = hb @ params["wvar"] + params["bvar"]
    assert jnp.allclose(var_b, jnp.maximum(zb, 0.0) + jnp.log1p(jnp.exp(-jnp.abs(zb))), atol=1e-5)
    assert jnp.allclose(val_b, hb @ params["wv"] + params["bv"], atol=1e-5)

    print("KERNEL_OK")
</pallas_src>

<mosaic_0001>
module attributes {stable_mosaic.version = 11 : i64} {
  func.func @_a2c_fused_kernel(%arg0: i32, %arg1: memref<8x24xf32, #tpu.memory_space<vmem>>, %arg2: memref<24x128xf32, #tpu.memory_space<vmem>>, %arg3: memref<1x128xf32, #tpu.memory_space<vmem>>, %arg4: memref<128x128xf32, #tpu.memory_space<vmem>>, %arg5: memref<1x128xf32, #tpu.memory_space<vmem>>, %arg6: memref<8x128xf32, #tpu.memory_space<vmem>>) attributes {dimension_semantics = [#tpu.dimension_semantics<parallel>], iteration_bounds = array<i64: 1>, scalar_prefetch = 0 : i64, scratch_operands = 0 : i64, tpu.core_type = #tpu.core_type<tc>, window_params = [{transform_indices = @transform_0, window_bounds = array<i64: 8, 24>}, {pipeline_mode = #tpu.pipeline_mode<synchronous>, transform_indices = @transform_1, window_bounds = array<i64: 24, 128>}, {pipeline_mode = #tpu.pipeline_mode<synchronous>, transform_indices = @transform_2, window_bounds = array<i64: 1, 128>}, {pipeline_mode = #tpu.pipeline_mode<synchronous>, transform_indices = @transform_3, window_bounds = array<i64: 128, 128>}, {pipeline_mode = #tpu.pipeline_mode<synchronous>, transform_indices = @transform_4, window_bounds = array<i64: 1, 128>}, {transform_indices = @transform_5, window_bounds = array<i64: 8, 128>}]} {
    %c0 = arith.constant 0 : index
    %c0_0 = arith.constant 0 : index
    %0 = vector.load %arg1[%c0, %c0_0] : memref<8x24xf32, #tpu.memory_space<vmem>>, vector<8x24xf32>
    %c0_1 = arith.constant 0 : index
    %c0_2 = arith.constant 0 : index
    %1 = vector.load %arg2[%c0_1, %c0_2] : memref<24x128xf32, #tpu.memory_space<vmem>>, vector<24x128xf32>
    %cst = arith.constant dense<0.000000e+00> : vector<8x128xf32>
    %2 = tpu.matmul %0, %1, %cst {dimension_numbers = #tpu.dot_dimension_numbers<[1], [0], [0], [1], [0, 0, 1, 1], [], []>} : vector<8x24xf32>, vector<24x128xf32>, vector<8x128xf32> -> vector<8x128xf32>
    %c0_3 = arith.constant 0 : index
    %c0_4 = arith.constant 0 : index
    %3 = vector.load %arg3[%c0_3, %c0_4] : memref<1x128xf32, #tpu.memory_space<vmem>>, vector<1x128xf32>
    %4 = vector.broadcast %3 : vector<1x128xf32> to vector<8x128xf32>
    %5 = arith.addf %2, %4 : vector<8x128xf32>
    %cst_5 = arith.constant 0.000000e+00 : f32
    %6 = vector.broadcast %cst_5 : f32 to vector<8x128xf32>
    %7 = arith.maximumf %5, %6 : vector<8x128xf32>
    %c0_6 = arith.constant 0 : index
    %c0_7 = arith.constant 0 : index
    %8 = vector.load %arg4[%c0_6, %c0_7] : memref<128x128xf32, #tpu.memory_space<vmem>>, vector<128x128xf32>
    %cst_8 = arith.constant dense<0.000000e+00> : vector<8x128xf32>
    %9 = tpu.matmul %7, %8, %cst_8 {dimension_numbers = #tpu.dot_dimension_numbers<[1], [0], [0], [1], [0, 0, 1, 1], [], []>} : vector<8x128xf32>, vector<128x128xf32>, vector<8x128xf32> -> vector<8x128xf32>
    %c0_9 = arith.constant 0 : index
    %c0_10 = arith.constant 0 : index
    %10 = vector.load %arg5[%c0_9, %c0_10] : memref<1x128xf32, #tpu.memory_space<vmem>>, vector<1x128xf32>
    %11 = vector.broadcast %10 : vector<1x128xf32> to vector<8x128xf32>
    %12 = arith.addf %9, %11 : vector<8x128xf32>
    %13 = tpu.iota {dimensions = array<i32: 1>} : vector<8x128xi32>
    %14 = math.absf %12 : vector<8x128xf32>
    %cst_11 = arith.constant 0.000000e+00 : f32
    %15 = vector.broadcast %cst_11 : f32 to vector<8x128xf32>
    %16 = arith.subf %15, %14 : vector<8x128xf32>
    %17 = math.exp %16 : vector<8x128xf32>
    %c8_i32 = arith.constant 8 : i32
    %18 = vector.broadcast %c8_i32 : i32 to vector<8x128xi32>
    %19 = arith.cmpi slt, %13, %18 : vector<8x128xi32>
    %cst_12 = arith.constant 0.000000e+00 : f32
    %20 = vector.broadcast %cst_12 : f32 to vector<8x128xf32>
    %21 = arith.maximumf %12, %20 : vector<8x128xf32>
    %22 = math.log1p %17 : vector<8x128xf32>
    %23 = arith.addf %21, %22 : vector<8x128xf32>
    %24 = arith.select %19, %23, %12 : vector<8x128xi1>, vector<8x128xf32>
    %25 = arith.mulf %17, %17 : vector<8x128xf32>
    %cst_13 = arith.constant 1.000000e+00 : f32
    %26 = vector.broadcast %cst_13 : f32 to vector<8x128xf32>
    %27 = arith.subf %26, %25 : vector<8x128xf32>
    %cst_14 = arith.constant 1.000000e+00 : f32
    %28 = vector.broadcast %cst_14 : f32 to vector<8x128xf32>
    %29 = arith.addf %28, %25 : vector<8x128xf32>
    %30 = arith.divf %27, %29 : vector<8x128xf32>
    %cst_15 = arith.constant 0.000000e+00 : f32
    %31 = vector.broadcast %cst_15 : f32 to vector<8x128xf32>
    %32 = arith.cmpf oge, %12, %31 : vector<8x128xf32>
    %cst_16 = arith.constant 0.000000e+00 : f32
    %33 = vector.broadcast %cst_16 : f32 to vector<8x128xf32>
    %34 = arith.subf %33, %30 : vector<8x128xf32>
    %35 = arith.select %32, %30, %34 : vector<8x128xi1>, vector<8x128xf32>
    %c4_i32 = arith.constant 4 : i32
    %36 = vector.broadcast %c4_i32 : i32 to vector<8x128xi32>
    %37 = arith.cmpi slt, %13, %36 : vector<8x128xi32>
    %38 = arith.select %37, %35, %24 : vector<8x128xi1>, vector<8x128xf32>
    %c0_17 = arith.constant 0 : index
    %c0_18 = arith.constant 0 : index
    %39 = vector.load %arg6[%c0_17, %c0_18] : memref<8x128xf32, #tpu.memory_space<vmem>>, vector<8x128xf32>
    tpu.vector_store %arg6[%c0_17, %c0_18], %38 {strides = array<i32>} : memref<8x128xf32, #tpu.memory_space<vmem>>, vector<8x128xf32>,
    return
  }
  func.func @transform_0(%arg0: i32) -> (i32, i32) {
    %c0_i32 = arith.constant 0 : i32
    %c0_i32_0 = arith.constant 0 : i32
    return %arg0, %c0_i32 : i32, i32
  }
  func.func @transform_1(%arg0: i32) -> (i32, i32) {
    %c0_i32 = arith.constant 0 : i32
    %c0_i32_0 = arith.constant 0 : i32
    %c0_i32_1 = arith.constant 0 : i32
    return %c0_i32, %c0_i32_0 : i32, i32
  }
  func.func @transform_2(%arg0: i32) -> (i32, i32) {
    %c0_i32 = arith.constant 0 : i32
    %c0_i32_0 = arith.constant 0 : i32
    %c0_i32_1 = arith.constant 0 : i32
    return %c0_i32, %c0_i32_0 : i32, i32
  }
  func.func @transform_3(%arg0: i32) -> (i32, i32) {
    %c0_i32 = arith.constant 0 : i32
    %c0_i32_0 = arith.constant 0 : i32
    %c0_i32_1 = arith.constant 0 : i32
    return %c0_i32, %c0_i32_0 : i32, i32
  }
  func.func @transform_4(%arg0: i32) -> (i32, i32) {
    %c0_i32 = arith.constant 0 : i32
    %c0_i32_0 = arith.constant 0 : i32
    %c0_i32_1 = arith.constant 0 : i32
    return %c0_i32, %c0_i32_0 : i32, i32
  }
  func.func @transform_5(%arg0: i32) -> (i32, i32) {
    %c0_i32 = arith.constant 0 : i32
    %c0_i32_0 = arith.constant 0 : i32
    return %arg0, %c0_i32 : i32, i32
  }
}

</mosaic_0001>

<llo_original>
// kernel: tpu_custom_call.1
$region0: #{tpu_custom_call.1}
  #allocation0 [shape = 'u32[]', space=smem, size = 0x4, offset = 0x4, fixed_abs, tag = 'smem constant byte address 0x4 - core index']
  #allocation1 [shape = 'u32[144,128]{1,0:T(1,128)}', space=vmem, size = 0x12000, scoped, tag = 'internal scratch']
  %s0 = inlined_call_operand.hbm [shape: f32[8,24], index: 0, kind: input, shape index: {}]
  %s1 = inlined_call_operand.hbm [shape: f32[24,128], index: 1, kind: input, shape index: {}]
  %s2 = inlined_call_operand.vmem [shape: f32[1,128], index: 2, kind: input, shape index: {}]
  %s3 = inlined_call_operand.hbm [shape: f32[128,128], index: 3, kind: input, shape index: {}]
  %s4 = inlined_call_operand.vmem [shape: f32[1,128], index: 4, kind: input, shape index: {}]
  %s5 = inlined_call_operand.hbm [shape: f32[8,128], index: 5, kind: output, shape index: {}]
  %s6 = sld [smem:[#allocation0]]
  $region42: #{tpu_custom_call.1} parent=0
    _
  %s8 = ssub.s32 1, %s6
  %s9 = scalar_select 0, %s8, %s6
  $region1: #{tpu_custom_call.1} parent=0
    #allocation2 [shape = 'u8[4096]{0}', space=vmem, size = 0x1000, scoped, tag = 'input window, operand 0, single buffered']
    #allocation3 [shape = 's32[1]{0}', space=sflag, size = 0x4, scoped, tag = 'scoped memory for tpu_custom_call.1']
    #allocation4 [shape = 's32[1]{0}', space=sflag, size = 0x4, scoped, tag = 'scoped memory for tpu_custom_call.1']
    #allocation5 [shape = 'u8[12288]{0}', space=vmem, size = 0x3000, scoped, tag = 'input window, operand 1, single buffered']
    #allocation6 [shape = 's32[1]{0}', space=sflag, size = 0x4, scoped, tag = 'scoped memory for tpu_custom_call.1']
    #allocation7 [shape = 'u8[65536]{0}', space=vmem, size = 0x10000, scoped, tag = 'input window, operand 3, single buffered']
    #allocation8 [shape = 'u8[4096]{0}', space=vmem, size = 0x1000, scoped, tag = 'output window, operand 0, single buffered']
    %10 = vsyncpa [#allocation3], 0
    %11 = vsyncpa [#allocation6], 0
    %12 = vsyncpa [#allocation4], 0
    // Predicated region
    $region2: #{tpu_custom_call.1} parent=1 // pred_check
      _
    $region3: #{tpu_custom_call.1} parent=1 // pred_check_branch
      %14 = sbr.rel (0) target = $region5
    $region4: #{tpu_custom_call.1} parent=1 // pred_region
      %s16 = ssub.s32 128, 128
      %17 = vsyncadd [#allocation3], %s16
      %s19 = sshll.u32 [#allocation2], 4
      %s20 = int_to_ptr.vmem [resolvable:$true] %s19
      %22 = dma.hbm_to_vmem [thread:$0]  %s0, 128, %s20, [#allocation3]
    $region5: #{tpu_custom_call.1} parent=1 // pred_fallthru
      _
    // Predicated region
    $region6: #{tpu_custom_call.1} parent=1 // pred_check
      _
    $region7: #{tpu_custom_call.1} parent=1 // pred_check_branch
      %24 = sbr.rel (0) target = $region9
    $region8: #{tpu_custom_call.1} parent=1 // pred_region
      %s26 = ssub.s32 384, 384
      %27 = vsyncadd [#allocation6], %s26
      %s28 = sshll.u32 [#allocation5], 4
      %s29 = int_to_ptr.vmem [resolvable:$true] %s28
      %34 = dma.hbm_to_vmem [thread:$0]  %s1, 384, %s29, [#allocation6], 128, 128, 8
    $region9: #{tpu_custom_call.1} parent=1 // pred_fallthru
      _
    // Predicated region
    $region10: #{tpu_custom_call.1} parent=1 // pred_check
      _
    $region11: #{tpu_custom_call.1} parent=1 // pred_check_branch
      %36 = sbr.rel (0) target = $region13
    $region12: #{tpu_custom_call.1} parent=1 // pred_region
      _
    $region13: #{tpu_custom_call.1} parent=1 // pred_fallthru
      _
    // Predicated region
    $region14: #{tpu_custom_call.1} parent=1 // pred_check
      _
    $region15: #{tpu_custom_call.1} parent=1 // pred_check_branch
      %38 = sbr.rel (0) target = $region17
    $region16: #{tpu_custom_call.1} parent=1 // pred_region
      %s40 = ssub.s32 2048, 2048
      %41 = vsyncadd [#allocation6], %s40
      %s42 = sshll.u32 [#allocation7], 4
      %s43 = int_to_ptr.vmem [resolvable:$true] %s42
      %48 = dma.hbm_to_vmem [thread:$0]  %s3, 2048, %s43, [#allocation6], 128, 128, 8
    $region17: #{tpu_custom_call.1} parent=1 // pred_fallthru
      _
    // Predicated region
    $region18: #{tpu_custom_call.1} parent=1 // pred_check
      _
    $region19: #{tpu_custom_call.1} parent=1 // pred_check_branch
      %50 = sbr.rel (0) target = $region21
    $region20: #{tpu_custom_call.1} parent=1 // pred_region
      _
    $region21: #{tpu_custom_call.1} parent=1 // pred_fallthru
      _
    // Predicated region
    $region22: #{tpu_custom_call.1} parent=1 // pred_check
      _
    $region23: #{tpu_custom_call.1} parent=1 // pred_check_branch
      %52 = sbr.rel (0) target = $region25
    $region24: #{tpu_custom_call.1} parent=1 // pred_region
      %53 = dma.done [#allocation3], 128
    $region25: #{tpu_custom_call.1} parent=1 // pred_fallthru
      _
    // Predicated region
    $region26: #{tpu_custom_call.1} parent=1 // pred_check
      _
    $region27: #{tpu_custom_call.1} parent=1 // pred_check_branch
      %55 = sbr.rel (0) target = $region29
    $region28: #{tpu_custom_call.1} parent=1 // pred_region
      %56 = dma.done [#allocation6], 384
    $region29: #{tpu_custom_call.1} parent=1 // pred_fallthru
      _
    // Predicated region
    $region30: #{tpu_custom_call.1} parent=1 // pred_check
      _
    $region31: #{tpu_custom_call.1} parent=1 // pred_check_branch
      %58 = sbr.rel (0) target = $region33
    $region32: #{tpu_custom_call.1} parent=1 // pred_region
      %59 = dma.done [#allocation6], 2048
    $region33: #{tpu_custom_call.1} parent=1 // pred_fallthru
      _
    %v60 = vld [vmem:[#allocation2] sm:$0xff]
    %v61 = vld [vmem:[#allocation5] sm:$0xff]
    %v62 = vld [vmem:[#allocation5 + $0x8] sm:$0xff]
    %v63 = vld [vmem:[#allocation5 + $0x10] sm:$0xff]
    %v64 = vld [vmem:[%s2] sm:$0x1]
    %v66 = vlaneseq
    %v67 = vshrl.u32 %v66, 7
    %v68 = vsub.s32 0, %v67
    %v69 = vrot.slane %v64, %v68
    %vm71 = vcmask 195584
    %v73 = vsel %vm71, %v60, 0
    %75 = vmatprep.subr.mxu0 0.0
    %76 = vmatpush1.msra.mxu0 %v61
    %77 = vmatprep.subr.mxu0 0.0
    %78 = vmatpush1.msra.mxu0 %v62
    %79 = vmatprep.subr.mxu0 0.0
    %80 = vmatpush1.msra.mxu0 %v63
    %81 = vmatprep.subr.mxu0 0.0
    %82 = vmatpush1.msra.mxu0 0.0
    %83 = vmatprep.subr.mxu0 0.0
    %84 = vmatpush1.msra.mxu0 0.0
    %85 = vmatprep.subr.mxu0 0.0
    %86 = vmatpush1.msra.mxu0 0.0
    %87 = vmatprep.subr.mxu0 0.0
    %88 = vmatpush1.msra.mxu0 0.0
    %89 = vmatprep.subr.mxu0 0.0
    %90 = vmatpush1.msra.mxu0 0.0
    %91 = vmatprep.subr.mxu0 0.0
    %92 = vmatpush1.msra.mxu0 0.0
    %93 = vmatprep.subr.mxu0 0.0
    %94 = vmatpush1.msra.mxu0 0.0
    %95 = vmatprep.subr.mxu0 0.0
    %96 = vmatpush1.msra.mxu0 0.0
    %97 = vmatprep.subr.mxu0 0.0
    %98 = vmatpush1.msra.mxu0 0.0
    %99 = vmatprep.subr.mxu0 0.0
    %100 = vmatpush1.msra.mxu0 0.0
    %101 = vmatprep.subr.mxu0 0.0
    %102 = vmatpush1.msra.mxu0 0.0
    %103 = vmatprep.subr.mxu0 0.0
    %104 = vmatpush1.msra.mxu0 0.0
    %105 = vmatprep.subr.mxu0 0.0
    %106 = vmatpush1.msra.mxu0 0.0
    %107 = vmatprep.subr.mxu0 0.0
    %108 = vmatpush1.msra.mxu0 0.0
    %109 = vmatprep.subr.mxu0 0.0
    %110 = vmatpush1.msra.mxu0 0.0
    %111 = vmatprep.subr.mxu0 0.0
    %112 = vmatpush1.msra.mxu0 0.0
    %113 = vmatprep.subr.mxu0 0.0
    %114 = vmatpush1.msra.mxu0 0.0
    %115 = vmatprep.subr.mxu0 0.0
    %116 = vmatpush1.msra.mxu0 0.0
    %117 = vmatprep.subr.mxu0 0.0
    %118 = vmatpush1.msra.mxu0 0.0
    %119 = vmatprep.subr.mxu0 0.0
    %120 = vmatpush1.msra.mxu0 0.0
    %121 = vmatprep.subr.mxu0 0.0
    %122 = vmatpush1.msra.mxu0 0.0
    %123 = vmatprep.subr.mxu0 0.0
    %124 = vmatpush1.msra.mxu0 0.0
    %125 = vmatprep.subr.mxu0 0.0
    %126 = vmatpush1.msra.mxu0 0.0
    %127 = vmatprep.subr.mxu0 0.0
    %128 = vmatpush1.msra.mxu0 0.0
    %129 = vmatprep.subr.mxu0 0.0
    %130 = vmatpush1.msra.mxu0 0.0
    %131 = vmatprep.subr.mxu0 0.0
    %132 = vmatpush1.msra.mxu0 0.0
    %133 = vmatprep.subr.mxu0 0.0
    %134 = vmatpush1.msra.mxu0 0.0
    %135 = vmatprep.subr.mxu0 0.0
    %136 = vmatpush1.msra.mxu0 0.0
    %137 = vmatprep.subr.mxu0 0.0
    %138 = vmatpush1.msra.mxu0 0.0
    %139 = vmatprep.mubr.f32.mxu0 0.0
    %140 = vmatmul.mubr.f32.gmra.mrb[0].mxu0 %v73
    %v141 = vpop.f32.mrb[0].mxu0
    %v142 = vadd.f32 %v69, %v141
    %v143 = vpop.f32.mrb[0].mxu0
    %144 = vdwg.mxu0
    %v145 = vmax.f32 %v142, 0.0
    %v146 = vld [vmem:[#allocation7] sm:$0xff]
    %v147 = vld [vmem:[#allocation7 + $0x8] sm:$0xff]
    %v148 = vld [vmem:[#allocation7 + $0x10] sm:$0xff]
    %v149 = vld [vmem:[#allocation7 + $0x18] sm:$0xff]
    %v150 = vld [vmem:[#allocation7 + $0x20] sm:$0xff]
    %v151 = vld [vmem:[#allocation7 + $0x28] sm:$0xff]
    %v152 = vld [vmem:[#allocation7 + $0x30] sm:$0xff]
    %v153 = vld [vmem:[#allocation7 + $0x38] sm:$0xff]
    %v154 = vld [vmem:[#allocation7 + $0x40] sm:$0xff]
    %v155 = vld [vmem:[#allocation7 + $0x48] sm:$0xff]
    %v156 = vld [vmem:[#allocation7 + $0x50] sm:$0xff]
    %v157 = vld [vmem:[#allocation7 + $0x58] sm:$0xff]
    %v158 = vld [vmem:[#allocation7 + $0x60] sm:$0xff]
    %v159 = vld [vmem:[#allocation7 + $0x68] sm:$0xff]
    %v160 = vld [vmem:[#allocation7 + $0x70] sm:$0xff]
    %v161 = vld [vmem:[#allocation7 + $0x78] sm:$0xff]
    %v162 = vld [vmem:[%s4] sm:$0x1]
    %v164 = vlaneseq
    %v165 = vshrl.u32 %v164, 7
    %v166 = vsub.s32 0, %v165
    %v167 = vrot.slane %v162, %v166
    %169 = vmatprep.subr.mxu0 0.0
    %170 = vmatpush1.msra.mxu0 %v146
    %171 = vmatprep.subr.mxu0 0.0
    %172 = vmatpush1.msra.mxu0 %v147
    %173 = vmatprep.subr.mxu0 0.0
    %174 = vmatpush1.msra.mxu0 %v148
    %175 = vmatprep.subr.mxu0 0.0
    %176 = vmatpush1.msra.mxu0 %v149
    %177 = vmatprep.subr.mxu0 0.0
    %178 = vmatpush1.msra.mxu0 %v150
    %179 = vmatprep.subr.mxu0 0.0
    %180 = vmatpush1.msra.mxu0 %v151
    %181 = vmatprep.subr.mxu0 0.0
    %182 = vmatpush1.msra.mxu0 %v152
    %183 = vmatprep.subr.mxu0 0.0
    %184 = vmatpush1.msra.mxu0 %v153
    %185 = vmatprep.subr.mxu0 0.0
    %186 = vmatpush1.msra.mxu0 %v154
    %187 = vmatprep.subr.mxu0 0.0
    %188 = vmatpush1.msra.mxu0 %v155
    %189 = vmatprep.subr.mxu0 0.0
    %190 = vmatpush1.msra.mxu0 %v156
    %191 = vmatprep.subr.mxu0 0.0
    %192 = vmatpush1.msra.mxu0 %v157
    %193 = vmatprep.subr.mxu0 0.0
    %194 = vmatpush1.msra.mxu0 %v158
    %195 = vmatprep.subr.mxu0 0.0
    %196 = vmatpush1.msra.mxu0 %v159
    %197 = vmatprep.subr.mxu0 0.0
    %198 = vmatpush1.msra.mxu0 %v160
    %199 = vmatprep.subr.mxu0 0.0
    %200 = vmatpush1.msra.mxu0 %v161
    %201 = vmatprep.subr.mxu0 0.0
    %202 = vmatpush1.msra.mxu0 0.0
    %203 = vmatprep.subr.mxu0 0.0
    %204 = vmatpush1.msra.mxu0 0.0
    %205 = vmatprep.subr.mxu0 0.0
    %206 = vmatpush1.msra.mxu0 0.0
    %207 = vmatprep.subr.mxu0 0.0
    %208 = vmatpush1.msra.mxu0 0.0
    %209 = vmatprep.subr.mxu0 0.0
    %210 = vmatpush1.msra.mxu0 0.0
    %211 = vmatprep.subr.mxu0 0.0
    %212 = vmatpush1.msra.mxu0 0.0
    %213 = vmatprep.subr.mxu0 0.0
    %214 = vmatpush1.msra.mxu0 0.0
    %215 = vmatprep.subr.mxu0 0.0
    %216 = vmatpush1.msra.mxu0 0.0
    %217 = vmatprep.subr.mxu0 0.0
    %218 = vmatpush1.msra.mxu0 0.0
    %219 = vmatprep.subr.mxu0 0.0
    %220 = vmatpush1.msra.mxu0 0.0
    %221 = vmatprep.subr.mxu0 0.0
    %222 = vmatpush1.msra.mxu0 0.0
    %223 = vmatprep.subr.mxu0 0.0
    %224 = vmatpush1.msra.mxu0 0.0
    %225 = vmatprep.subr.mxu0 0.0
    %226 = vmatpush1.msra.mxu0 0.0
    %227 = vmatprep.subr.mxu0 0.0
    %228 = vmatpush1.msra.mxu0 0.0
    %229 = vmatprep.subr.mxu0 0.0
    %230 = vmatpush1.msra.mxu0 0.0
    %231 = vmatprep.subr.mxu0 0.0
    %232 = vmatpush1.msra.mxu0 0.0
    %233 = vmatprep.mubr.f32.mxu0 0.0
    %234 = vmatmul.mubr.f32.gmra.mrb[0].mxu0 %v145
    %v235 = vpop.f32.mrb[0].mxu0
    %v236 = vadd.f32 %v167, %v235
    %v237 = vpop.f32.mrb[0].mxu0
    %238 = vdwg.mxu0
    %v239 = vlaneseq
    %v240 = vand.u32 %v239, 127
    %v241 = vand.u32 2147483647, %v236
    %v242 = vsub.f32 0.0, %v241
    %v243 = vmul.f32 %v242, 1.442695
    %v244 = vpow.pop %v243
    %vm245 = vcmp.lt.s32.totalorder %v240, 8
    %v246 = vmax.f32 %v236, 0.0
    %v247 = vadd.f32 %v244, 1.0
    %v248 = vlog2.pop %v247
    %v249 = vmul.f32 %v248, 0.6931472
    %v250 = vmul.f32 -0.5, %v244
    %v251 = vadd.f32 %v250, 1.0
    %v252 = vmul.f32 %v251, %v244
    %v253 = vand.u32 2147483647, %v244
    %vm254 = vcmp.lt.f32.partialorder %v253, 0.0004427343
    %v255 = vsel %vm254, %v252, %v249
    %v256 = vadd.f32 %v246, %v255
    %v257 = vsel %vm245, %v256, %v236
    %v258 = vmul.f32 %v244, %v244
    %v259 = vsub.f32 1.0, %v258
    %v260 = vadd.f32 %v258, 1.0
    %v261 = vrcp.pop %v260
    %v262 = vmul.f32 %v259, %v261
    %vm263 = vcmp.ge.f32.partialorder %v236, 0.0
    %v264 = vsub.f32 0.0, %v262
    %v265 = vsel %vm263, %v262, %v264
    %vm266 = vcmp.lt.s32.totalorder %v240, 4
    %v267 = vsel %vm266, %v265, %v257
    %268 = vst [vmem:[#allocation8] sm:$0xff] %v267
    // Predicated region
    $region34: #{tpu_custom_call.1} parent=1 // pred_check
      _
    $region35: #{tpu_custom_call.1} parent=1 // pred_check_branch
      %270 = sbr.rel (0) target = $region37
    $region36: #{tpu_custom_call.1} parent=1 // pred_region
      %s272 = ssub.s32 128, 128
      %273 = vsyncadd [#allocation4], %s272
      %s275 = sshll.u32 [#allocation8], 4
      %s276 = int_to_ptr.vmem [resolvable:$true] %s275
      %278 = dma.vmem_to_hbm [thread:$0]  %s276, 128, %s5, [#allocation4]
    $region37: #{tpu_custom_call.1} parent=1 // pred_fallthru
      _
    // Predicated region
    $region38: #{tpu_custom_call.1} parent=1 // pred_check
      _
    $region39: #{tpu_custom_call.1} parent=1 // pred_check_branch
      %280 = sbr.rel (0) target = $region41
    $region40: #{tpu_custom_call.1} parent=1 // pred_region
      %281 = dma.done [#allocation4], 128
    $region41: #{tpu_custom_call.1} parent=1 // pred_fallthru
      _
    %282 = vsyncpa [#allocation3], 1
    %283 = vsyncpa [#allocation6], 1
    %284 = vsyncpa [#allocation4], 1

</llo_original>
